<compile_context>
chip_gen: v7x
topology: tpu7x:2x2x1
jax: 0.10.0
libtpu: 0.0.40
codegen_flags: <defaults>
</compile_context>

<pallas_src>
import functools

import jax
import jax.numpy as jnp
from jax.experimental import pallas as pl
from jax.experimental.pallas import tpu as pltpu

LANE = 128        # every feature (output) dim is padded to the 128-lane width
SUBLANE = 8       # f32 sublane tile; contraction dims are padded to this
BATCH_TILE = 256  # batch tile, used only when padded batch exceeds this


def _round_up(n, m):
    return ((n + m - 1) // m) * m


# ---------------------------------------------------------------------------
# Fused MLP kernel: h = relu(h @ W_l + b_l) for l < L-1; last layer no ReLU.
# ---------------------------------------------------------------------------
def _fused_mlp_kernel(x_ref, w_ref, b_ref, o_ref, *, n_layers, k_pad):
    """
    x_ref: (TB, LANE)        f32 padded input activations
    w_ref: (L, K_pad, LANE)  f32 padded weights, stored [in, out]
    b_ref: (L, LANE)         f32 padded biases
    o_ref: (TB, LANE)        f32 padded output slab (lane-dense store)
    """
    h = x_ref[...]
    # Static unroll; n_layers is small and each weight tile is k_pad/8 vregs.
    for li in range(n_layers):
        w = w_ref[li]                        # (K_pad, LANE)
        b = b_ref[pl.ds(li, 1), :]           # (1, LANE) -> broadcasts over batch
        # Only the first k_pad lanes of h are ever nonzero (zero padding
        # propagates exact zeros), so contracting over k_pad is exact.
        h = jnp.dot(h[:, :k_pad], w, preferred_element_type=jnp.float32) + b
        if li != n_layers - 1:
            h = jnp.maximum(h, 0.0)
    o_ref[...] = h.astype(o_ref.dtype)


def fused_mlp(x_pad, w_stack, b_stack, *, flops, bytes_accessed):
    B, P = x_pad.shape
    L, k_pad, _ = w_stack.shape
    kernel = functools.partial(_fused_mlp_kernel, n_layers=L, k_pad=k_pad)
    cost = pl.CostEstimate(flops=flops, transcendentals=0,
                           bytes_accessed=bytes_accessed)

    if B <= BATCH_TILE:
        # Single invocation, no grid: whole problem resident in VMEM; no
        # pipeline machinery for a 1-point grid.
        spec = pl.BlockSpec(memory_space=pltpu.MemorySpace.VMEM)
        return pl.pallas_call(
            kernel,
            out_shape=jax.ShapeDtypeStruct((B, P), jnp.float32),
            in_specs=[spec, spec, spec],
            out_specs=spec,
            cost_estimate=cost,
        )(x_pad, w_stack, b_stack)

    # Large-batch path: tile the batch (parallel axis -> both TCs on v7x and
    # auto double-buffered activation pipelining); weight/bias stacks map to
    # the same block every step, so they stay resident.
    grid = (B // BATCH_TILE,)
    return pl.pallas_call(
        kernel,
        out_shape=jax.ShapeDtypeStruct((B, P), jnp.float32),
        grid_spec=pltpu.PrefetchScalarGridSpec(
            num_scalar_prefetch=0,
            grid=grid,
            in_specs=[pl.BlockSpec((BATCH_TILE, P), lambda i: (i, 0)),
                      pl.BlockSpec((L, k_pad, P), lambda i: (0, 0, 0)),
                      pl.BlockSpec((L, P), lambda i: (0, 0))],
            out_specs=pl.BlockSpec((BATCH_TILE, P), lambda i: (i, 0))),
        compiler_params=pltpu.CompilerParams(
            dimension_semantics=("parallel",)),
        cost_estimate=cost,
    )(x_pad, w_stack, b_stack)


# ---------------------------------------------------------------------------
# Parameter init (mimics PyTorch nn.Linear U(-1/sqrt(fan_in), 1/sqrt(fan_in)))
# and packing into the padded, stacked layout consumed by the kernel.
# ---------------------------------------------------------------------------
def init_simple_nn(key, input_size, hidden_size, output_size, depth):
    dims = (input_size,) + (hidden_size,) * depth + (output_size,)
    params = []
    for fan_in, fan_out in zip(dims[:-1], dims[1:]):
        key, kw, kb = jax.random.split(key, 3)
        bound = 1.0 / (fan_in ** 0.5)
        # stored as [in, out] (transposed vs torch's [out, in])
        w = jax.random.uniform(kw, (fan_in, fan_out), jnp.float32, -bound, bound)
        b = jax.random.uniform(kb, (fan_out,), jnp.float32, -bound, bound)
        params.append((w, b))
    return params


def pack_params(params):
    """Pad weights to [L, K_pad, LANE] (K_pad = round_up(max fan_in, 8)) and
    biases to a flat [L, LANE] slab."""
    L = len(params)
    k_pad = _round_up(max(w.shape[0] for w, _ in params), SUBLANE)
    assert k_pad <= LANE, "fan_in > 128 not supported by this tiny-MLP layout"
    w_stack = jnp.zeros((L, k_pad, LANE), jnp.float32)
    b_stack = jnp.zeros((L, LANE), jnp.float32)
    for li, (w, b) in enumerate(params):
        fi, fo = w.shape
        assert fi <= k_pad and fo <= LANE
        w_stack = w_stack.at[li, :fi, :fo].set(w)
        b_stack = b_stack.at[li, :fo].set(b)
    return w_stack, b_stack


# ---------------------------------------------------------------------------
# Forward pass (single fused pallas_call) and pure-JAX reference.
# ---------------------------------------------------------------------------
@functools.partial(jax.jit, static_argnames=("dims",))
def simple_nn_forward(x, w_stack, b_stack, *, dims):
    B, K = x.shape
    assert K == dims[0]
    P = w_stack.shape[-1]
    if B <= BATCH_TILE:
        B_pad = _round_up(B, SUBLANE)
    else:
        B_pad = _round_up(B, BATCH_TILE)
    x_pad = jnp.zeros((B_pad, P), jnp.float32).at[:B, :K].set(x)
    # Real (unpadded) work for the scheduler, not padded work.
    layer_io = list(zip(dims[:-1], dims[1:]))
    flops = 2 * B * sum(fi * fo for fi, fo in layer_io)
    bytes_accessed = 4 * (B * dims[0]
                          + sum(fi * fo + fo for fi, fo in layer_io)
                          + B * dims[-1])
    out_pad = fused_mlp(x_pad, w_stack, b_stack,
                        flops=flops, bytes_accessed=bytes_accessed)
    return out_pad[:B, :dims[-1]]


def simple_nn_reference(params, x):
    h = x
    n_layers = len(params)
    for li, (w, b) in enumerate(params):
        h = h @ w + b[None, :]
        if li != n_layers - 1:
            h = jnp.maximum(h, 0.0)
    return h


if __name__ == "__main__":
    # Small shapes consistent with the module's forward (2-D [batch, features]).
    batch, input_size, hidden_size, output_size, depth = 8, 16, 32, 4, 3
    dims = (input_size,) + (hidden_size,) * depth + (output_size,)

    key = jax.random.PRNGKey(0)
    key, kx = jax.random.split(key)
    x = jax.random.normal(kx, (batch, input_size), jnp.float32)

    params = init_simple_nn(key, input_size, hidden_size, output_size, depth)
    w_stack, b_stack = pack_params(params)

    out = simple_nn_forward(x, w_stack, b_stack, dims=dims)
    out = jax.block_until_ready(out)

    ref = simple_nn_reference(params, x)
    assert out.shape == (batch, output_size)
    assert jnp.allclose(out, ref, atol=1e-5, rtol=1e-5)

    print("KERNEL_OK")
</pallas_src>

<mosaic_0001>
module attributes {stable_mosaic.version = 11 : i64} {
  func.func @_fused_mlp_kernel(%arg0: memref<8x128xf32, #tpu.memory_space<vmem>>, %arg1: memref<4x32x128xf32, #tpu.memory_space<vmem>>, %arg2: memref<4x128xf32, #tpu.memory_space<vmem>>, %arg3: memref<8x128xf32, #tpu.memory_space<vmem>>) attributes {dimension_semantics = [], scalar_prefetch = 0 : i64, scratch_operands = 0 : i64, tpu.core_type = #tpu.core_type<tc>} {
    %c0 = arith.constant 0 : index
    %c0_0 = arith.constant 0 : index
    %0 = vector.load %arg0[%c0, %c0_0] : memref<8x128xf32, #tpu.memory_space<vmem>>, vector<8x128xf32>
    %c0_1 = arith.constant 0 : index
    %c0_2 = arith.constant 0 : index
    %c0_3 = arith.constant 0 : index
    %1 = vector.load %arg1[%c0_1, %c0_2, %c0_3] : memref<4x32x128xf32, #tpu.memory_space<vmem>>, vector<1x32x128xf32>
    %2 = vector.shape_cast %1 : vector<1x32x128xf32> to vector<32x128xf32>
    %c0_4 = arith.constant 0 : index
    %c0_5 = arith.constant 0 : index
    %3 = vector.load %arg2[%c0_4, %c0_5] : memref<4x128xf32, #tpu.memory_space<vmem>>, vector<1x128xf32>
    %4 = vector.extract_strided_slice %0 {offsets = [0, 0], sizes = [8, 32], strides = [1, 1]} : vector<8x128xf32> to vector<8x32xf32>
    %cst = arith.constant dense<0.000000e+00> : vector<8x128xf32>
    %5 = tpu.matmul %4, %2, %cst {dimension_numbers = #tpu.dot_dimension_numbers<[1], [0], [0], [1], [0, 0, 1, 1], [], []>} : vector<8x32xf32>, vector<32x128xf32>, vector<8x128xf32> -> vector<8x128xf32>
    %6 = vector.broadcast %3 : vector<1x128xf32> to vector<8x128xf32>
    %7 = arith.addf %5, %6 : vector<8x128xf32>
    %cst_6 = arith.constant 0.000000e+00 : f32
    %8 = vector.broadcast %cst_6 : f32 to vector<8x128xf32>
    %9 = arith.maximumf %7, %8 : vector<8x128xf32>
    %c1 = arith.constant 1 : index
    %c0_7 = arith.constant 0 : index
    %c0_8 = arith.constant 0 : index
    %10 = vector.load %arg1[%c1, %c0_7, %c0_8] : memref<4x32x128xf32, #tpu.memory_space<vmem>>, vector<1x32x128xf32>
    %11 = vector.shape_cast %10 : vector<1x32x128xf32> to vector<32x128xf32>
    %c1_9 = arith.constant 1 : index
    %c0_10 = arith.constant 0 : index
    %12 = vector.load %arg2[%c1_9, %c0_10] : memref<4x128xf32, #tpu.memory_space<vmem>>, vector<1x128xf32>
    %13 = vector.extract_strided_slice %9 {offsets = [0, 0], sizes = [8, 32], strides = [1, 1]} : vector<8x128xf32> to vector<8x32xf32>
    %cst_11 = arith.constant dense<0.000000e+00> : vector<8x128xf32>
    %14 = tpu.matmul %13, %11, %cst_11 {dimension_numbers = #tpu.dot_dimension_numbers<[1], [0], [0], [1], [0, 0, 1, 1], [], []>} : vector<8x32xf32>, vector<32x128xf32>, vector<8x128xf32> -> vector<8x128xf32>
    %15 = vector.broadcast %12 : vector<1x128xf32> to vector<8x128xf32>
    %16 = arith.addf %14, %15 : vector<8x128xf32>
    %cst_12 = arith.constant 0.000000e+00 : f32
    %17 = vector.broadcast %cst_12 : f32 to vector<8x128xf32>
    %18 = arith.maximumf %16, %17 : vector<8x128xf32>
    %c2 = arith.constant 2 : index
    %c0_13 = arith.constant 0 : index
    %c0_14 = arith.constant 0 : index
    %19 = vector.load %arg1[%c2, %c0_13, %c0_14] : memref<4x32x128xf32, #tpu.memory_space<vmem>>, vector<1x32x128xf32>
    %20 = vector.shape_cast %19 : vector<1x32x128xf32> to vector<32x128xf32>
    %c2_15 = arith.constant 2 : index
    %c0_16 = arith.constant 0 : index
    %21 = vector.load %arg2[%c2_15, %c0_16] : memref<4x128xf32, #tpu.memory_space<vmem>>, vector<1x128xf32>
    %22 = vector.extract_strided_slice %18 {offsets = [0, 0], sizes = [8, 32], strides = [1, 1]} : vector<8x128xf32> to vector<8x32xf32>
    %cst_17 = arith.constant dense<0.000000e+00> : vector<8x128xf32>
    %23 = tpu.matmul %22, %20, %cst_17 {dimension_numbers = #tpu.dot_dimension_numbers<[1], [0], [0], [1], [0, 0, 1, 1], [], []>} : vector<8x32xf32>, vector<32x128xf32>, vector<8x128xf32> -> vector<8x128xf32>
    %24 = vector.broadcast %21 : vector<1x128xf32> to vector<8x128xf32>
    %25 = arith.addf %23, %24 : vector<8x128xf32>
    %cst_18 = arith.constant 0.000000e+00 : f32
    %26 = vector.broadcast %cst_18 : f32 to vector<8x128xf32>
    %27 = arith.maximumf %25, %26 : vector<8x128xf32>
    %c3 = arith.constant 3 : index
    %c0_19 = arith.constant 0 : index
    %c0_20 = arith.constant 0 : index
    %28 = vector.load %arg1[%c3, %c0_19, %c0_20] : memref<4x32x128xf32, #tpu.memory_space<vmem>>, vector<1x32x128xf32>
    %29 = vector.shape_cast %28 : vector<1x32x128xf32> to vector<32x128xf32>
    %c3_21 = arith.constant 3 : index
    %c0_22 = arith.constant 0 : index
    %30 = vector.load %arg2[%c3_21, %c0_22] : memref<4x128xf32, #tpu.memory_space<vmem>>, vector<1x128xf32>
    %31 = vector.extract_strided_slice %27 {offsets = [0, 0], sizes = [8, 32], strides = [1, 1]} : vector<8x128xf32> to vector<8x32xf32>
    %cst_23 = arith.constant dense<0.000000e+00> : vector<8x128xf32>
    %32 = tpu.matmul %31, %29, %cst_23 {dimension_numbers = #tpu.dot_dimension_numbers<[1], [0], [0], [1], [0, 0, 1, 1], [], []>} : vector<8x32xf32>, vector<32x128xf32>, vector<8x128xf32> -> vector<8x128xf32>
    %33 = vector.broadcast %30 : vector<1x128xf32> to vector<8x128xf32>
    %34 = arith.addf %32, %33 : vector<8x128xf32>
    %c0_24 = arith.constant 0 : index
    %c0_25 = arith.constant 0 : index
    %35 = vector.load %arg3[%c0_24, %c0_25] : memref<8x128xf32, #tpu.memory_space<vmem>>, vector<8x128xf32>
    tpu.vector_store %arg3[%c0_24, %c0_25], %34 {strides = array<i32>} : memref<8x128xf32, #tpu.memory_space<vmem>>, vector<8x128xf32>,
    return
  }
}

</mosaic_0001>

<llo_original>
// kernel: simple_nn_forward.1
$region0: #{simple_nn_forward.1}
  #allocation0 [shape = 'u32[]', space=smem, size = 0x4, offset = 0x4, fixed_abs, tag = 'smem constant byte address 0x4 - core index']
  #allocation1 [shape = 'u32[144,128]{1,0:T(1,128)}', space=vmem, size = 0x12000, scoped, tag = 'internal scratch']
  %s0 = inlined_call_operand.vmem [shape: f32[8,128], index: 0, kind: input, shape index: {}]
  %s1 = inlined_call_operand.hbm [shape: f32[4,32,128], index: 1, kind: input, shape index: {}]
  %s2 = inlined_call_operand.vmem [shape: f32[4,128], index: 2, kind: input, shape index: {}]
  %s3 = inlined_call_operand.vmem [shape: f32[8,128], index: 3, kind: output, shape index: {}]
  %s4 = sld [smem:[#allocation0]]
  $region26: #{simple_nn_forward.1} parent=0
    _
  %s6 = ssub.s32 1, %s4
  %s7 = scalar_select 0, %s6, %s4
  $region1: #{simple_nn_forward.1} parent=0
    #allocation2 [shape = 'u8[65536]{0}', space=vmem, size = 0x10000, scoped, tag = 'input window, operand 1, single buffered']
    #allocation3 [shape = 's32[1]{0}', space=sflag, size = 0x4, scoped, tag = 'scoped memory for simple_nn_forward.1']
    %8 = vsyncpa [#allocation3], 0
    // Predicated region
    $region2: #{simple_nn_forward.1} parent=1 // pred_check
      _
    $region3: #{simple_nn_forward.1} parent=1 // pred_check_branch
      %10 = sbr.rel (0) target = $region5
    $region4: #{simple_nn_forward.1} parent=1 // pred_region
      _
    $region5: #{simple_nn_forward.1} parent=1 // pred_fallthru
      _
    // Predicated region
    $region6: #{simple_nn_forward.1} parent=1 // pred_check
      _
    $region7: #{simple_nn_forward.1} parent=1 // pred_check_branch
      %12 = sbr.rel (0) target = $region9
    $region8: #{simple_nn_forward.1} parent=1 // pred_region
      %s14 = ssub.s32 2048, 2048
      %15 = vsyncadd [#allocation3], %s14
      %s16 = sshll.u32 [#allocation2], 4
      %s17 = int_to_ptr.vmem [resolvable:$true] %s16
      %22 = dma.hbm_to_vmem [thread:$0]  %s1, 2048, %s17, [#allocation3], 128, 128, 8
    $region9: #{simple_nn_forward.1} parent=1 // pred_fallthru
      _
    // Predicated region
    $region10: #{simple_nn_forward.1} parent=1 // pred_check
      _
    $region11: #{simple_nn_forward.1} parent=1 // pred_check_branch
      %24 = sbr.rel (0) target = $region13
    $region12: #{simple_nn_forward.1} parent=1 // pred_region
      _
    $region13: #{simple_nn_forward.1} parent=1 // pred_fallthru
      _
    // Predicated region
    $region14: #{simple_nn_forward.1} parent=1 // pred_check
      _
    $region15: #{simple_nn_forward.1} parent=1 // pred_check_branch
      %26 = sbr.rel (0) target = $region17
    $region16: #{simple_nn_forward.1} parent=1 // pred_region
      %27 = dma.done [#allocation3], 2048
    $region17: #{simple_nn_forward.1} parent=1 // pred_fallthru
      _
    %v28 = vld [vmem:[%s0] sm:$0xff]
    %v29 = vld [vmem:[#allocation2] sm:$0xff]
    %v30 = vld [vmem:[#allocation2 + $0x8] sm:$0xff]
    %v31 = vld [vmem:[#allocation2 + $0x10] sm:$0xff]
    %v32 = vld [vmem:[#allocation2 + $0x18] sm:$0xff]
    %v33 = vld [vmem:[%s2] sm:$0x1]
    %v34 = vlaneseq
    %v35 = vshrl.u32 %v34, 7
    %v36 = vsub.s32 0, %v35
    %v37 = vrot.slane %v33, %v36
    %vm38 = vcmask 261120
    %v40 = vsel %vm38, %v28, 0
    %42 = vmatprep.subr.mxu0 0.0
    %43 = vmatpush1.msra.mxu0 %v29
    %44 = vmatprep.subr.mxu0 0.0
    %45 = vmatpush1.msra.mxu0 %v30
    %46 = vmatprep.subr.mxu0 0.0
    %47 = vmatpush1.msra.mxu0 %v31
    %48 = vmatprep.subr.mxu0 0.0
    %49 = vmatpush1.msra.mxu0 %v32
    %50 = vmatprep.subr.mxu0 0.0
    %51 = vmatpush1.msra.mxu0 0.0
    %52 = vmatprep.subr.mxu0 0.0
    %53 = vmatpush1.msra.mxu0 0.0
    %54 = vmatprep.subr.mxu0 0.0
    %55 = vmatpush1.msra.mxu0 0.0
    %56 = vmatprep.subr.mxu0 0.0
    %57 = vmatpush1.msra.mxu0 0.0
    %58 = vmatprep.subr.mxu0 0.0
    %59 = vmatpush1.msra.mxu0 0.0
    %60 = vmatprep.subr.mxu0 0.0
    %61 = vmatpush1.msra.mxu0 0.0
    %62 = vmatprep.subr.mxu0 0.0
    %63 = vmatpush1.msra.mxu0 0.0
    %64 = vmatprep.subr.mxu0 0.0
    %65 = vmatpush1.msra.mxu0 0.0
    %66 = vmatprep.subr.mxu0 0.0
    %67 = vmatpush1.msra.mxu0 0.0
    %68 = vmatprep.subr.mxu0 0.0
    %69 = vmatpush1.msra.mxu0 0.0
    %70 = vmatprep.subr.mxu0 0.0
    %71 = vmatpush1.msra.mxu0 0.0
    %72 = vmatprep.subr.mxu0 0.0
    %73 = vmatpush1.msra.mxu0 0.0
    %74 = vmatprep.subr.mxu0 0.0
    %75 = vmatpush1.msra.mxu0 0.0
    %76 = vmatprep.subr.mxu0 0.0
    %77 = vmatpush1.msra.mxu0 0.0
    %78 = vmatprep.subr.mxu0 0.0
    %79 = vmatpush1.msra.mxu0 0.0
    %80 = vmatprep.subr.mxu0 0.0
    %81 = vmatpush1.msra.mxu0 0.0
    %82 = vmatprep.subr.mxu0 0.0
    %83 = vmatpush1.msra.mxu0 0.0
    %84 = vmatprep.subr.mxu0 0.0
    %85 = vmatpush1.msra.mxu0 0.0
    %86 = vmatprep.subr.mxu0 0.0
    %87 = vmatpush1.msra.mxu0 0.0
    %88 = vmatprep.subr.mxu0 0.0
    %89 = vmatpush1.msra.mxu0 0.0
    %90 = vmatprep.subr.mxu0 0.0
    %91 = vmatpush1.msra.mxu0 0.0
    %92 = vmatprep.subr.mxu0 0.0
    %93 = vmatpush1.msra.mxu0 0.0
    %94 = vmatprep.subr.mxu0 0.0
    %95 = vmatpush1.msra.mxu0 0.0
    %96 = vmatprep.subr.mxu0 0.0
    %97 = vmatpush1.msra.mxu0 0.0
    %98 = vmatprep.subr.mxu0 0.0
    %99 = vmatpush1.msra.mxu0 0.0
    %100 = vmatprep.subr.mxu0 0.0
    %101 = vmatpush1.msra.mxu0 0.0
    %102 = vmatprep.subr.mxu0 0.0
    %103 = vmatpush1.msra.mxu0 0.0
    %104 = vmatprep.subr.mxu0 0.0
    %105 = vmatpush1.msra.mxu0 0.0
    %106 = vmatprep.mubr.f32.mxu0 0.0
    %107 = vmatmul.mubr.f32.gmra.mrb[0].mxu0 %v40
    %v108 = vpop.f32.mrb[0].mxu0
    %v109 = vadd.f32 %v37, %v108
    %v110 = vpop.f32.mrb[0].mxu0
    %111 = vdwg.mxu0
    %v112 = vmax.f32 %v109, 0.0
    %s113 = scalar_lea.vmem [#allocation2], 32
    %v114 = vld [vmem:[%s113] sm:$0xff]
    %v115 = vld [vmem:[%s113 + $0x8] sm:$0xff]
    %v116 = vld [vmem:[%s113 + $0x10] sm:$0xff]
    %v117 = vld [vmem:[%s113 + $0x18] sm:$0xff]
    %v118 = vld [vmem:[%s2 + $0x1] sm:$0x1]
    %v119 = vlaneseq
    %v120 = vshrl.u32 %v119, 7
    %v121 = vsub.s32 0, %v120
    %v122 = vrot.slane %v118, %v121
    %v124 = vsel %vm38, %v112, 0
    %126 = vmatprep.subr.mxu0 0.0
    %127 = vmatpush1.msra.mxu0 %v114
    %128 = vmatprep.subr.mxu0 0.0
    %129 = vmatpush1.msra.mxu0 %v115
    %130 = vmatprep.subr.mxu0 0.0
    %131 = vmatpush1.msra.mxu0 %v116
    %132 = vmatprep.subr.mxu0 0.0
    %133 = vmatpush1.msra.mxu0 %v117
    %134 = vmatprep.subr.mxu0 0.0
    %135 = vmatpush1.msra.mxu0 0.0
    %136 = vmatprep.subr.mxu0 0.0
    %137 = vmatpush1.msra.mxu0 0.0
    %138 = vmatprep.subr.mxu0 0.0
    %139 = vmatpush1.msra.mxu0 0.0
    %140 = vmatprep.subr.mxu0 0.0
    %141 = vmatpush1.msra.mxu0 0.0
    %142 = vmatprep.subr.mxu0 0.0
    %143 = vmatpush1.msra.mxu0 0.0
    %144 = vmatprep.subr.mxu0 0.0
    %145 = vmatpush1.msra.mxu0 0.0
    %146 = vmatprep.subr.mxu0 0.0
    %147 = vmatpush1.msra.mxu0 0.0
    %148 = vmatprep.subr.mxu0 0.0
    %149 = vmatpush1.msra.mxu0 0.0
    %150 = vmatprep.subr.mxu0 0.0
    %151 = vmatpush1.msra.mxu0 0.0
    %152 = vmatprep.subr.mxu0 0.0
    %153 = vmatpush1.msra.mxu0 0.0
    %154 = vmatprep.subr.mxu0 0.0
    %155 = vmatpush1.msra.mxu0 0.0
    %156 = vmatprep.subr.mxu0 0.0
    %157 = vmatpush1.msra.mxu0 0.0
    %158 = vmatprep.subr.mxu0 0.0
    %159 = vmatpush1.msra.mxu0 0.0
    %160 = vmatprep.subr.mxu0 0.0
    %161 = vmatpush1.msra.mxu0 0.0
    %162 = vmatprep.subr.mxu0 0.0
    %163 = vmatpush1.msra.mxu0 0.0
    %164 = vmatprep.subr.mxu0 0.0
    %165 = vmatpush1.msra.mxu0 0.0
    %166 = vmatprep.subr.mxu0 0.0
    %167 = vmatpush1.msra.mxu0 0.0
    %168 = vmatprep.subr.mxu0 0.0
    %169 = vmatpush1.msra.mxu0 0.0
    %170 = vmatprep.subr.mxu0 0.0
    %171 = vmatpush1.msra.mxu0 0.0
    %172 = vmatprep.subr.mxu0 0.0
    %173 = vmatpush1.msra.mxu0 0.0
    %174 = vmatprep.subr.mxu0 0.0
    %175 = vmatpush1.msra.mxu0 0.0
    %176 = vmatprep.subr.mxu0 0.0
    %177 = vmatpush1.msra.mxu0 0.0
    %178 = vmatprep.subr.mxu0 0.0
    %179 = vmatpush1.msra.mxu0 0.0
    %180 = vmatprep.subr.mxu0 0.0
    %181 = vmatpush1.msra.mxu0 0.0
    %182 = vmatprep.subr.mxu0 0.0
    %183 = vmatpush1.msra.mxu0 0.0
    %184 = vmatprep.subr.mxu0 0.0
    %185 = vmatpush1.msra.mxu0 0.0
    %186 = vmatprep.subr.mxu0 0.0
    %187 = vmatpush1.msra.mxu0 0.0
    %188 = vmatprep.subr.mxu0 0.0
    %189 = vmatpush1.msra.mxu0 0.0
    %190 = vmatprep.mubr.f32.mxu0 0.0
    %191 = vmatmul.mubr.f32.gmra.mrb[0].mxu0 %v124
    %v192 = vpop.f32.mrb[0].mxu0
    %v193 = vadd.f32 %v122, %v192
    %v194 = vpop.f32.mrb[0].mxu0
    %195 = vdwg.mxu0
    %v196 = vmax.f32 %v193, 0.0
    %s197 = scalar_lea.vmem [#allocation2], 64
    %v198 = vld [vmem:[%s197] sm:$0xff]
    %v199 = vld [vmem:[%s197 + $0x8] sm:$0xff]
    %v200 = vld [vmem:[%s197 + $0x10] sm:$0xff]
    %v201 = vld [vmem:[%s197 + $0x18] sm:$0xff]
    %v202 = vld [vmem:[%s2 + $0x2] sm:$0x1]
    %v203 = vlaneseq
    %v204 = vshrl.u32 %v203, 7
    %v205 = vsub.s32 0, %v204
    %v206 = vrot.slane %v202, %v205
    %v208 = vsel %vm38, %v196, 0
    %210 = vmatprep.subr.mxu0 0.0
    %211 = vmatpush1.msra.mxu0 %v198
    %212 = vmatprep.subr.mxu0 0.0
    %213 = vmatpush1.msra.mxu0 %v199
    %214 = vmatprep.subr.mxu0 0.0
    %215 = vmatpush1.msra.mxu0 %v200
    %216 = vmatprep.subr.mxu0 0.0
    %217 = vmatpush1.msra.mxu0 %v201
    %218 = vmatprep.subr.mxu0 0.0
    %219 = vmatpush1.msra.mxu0 0.0
    %220 = vmatprep.subr.mxu0 0.0
    %221 = vmatpush1.msra.mxu0 0.0
    %222 = vmatprep.subr.mxu0 0.0
    %223 = vmatpush1.msra.mxu0 0.0
    %224 = vmatprep.subr.mxu0 0.0
    %225 = vmatpush1.msra.mxu0 0.0
    %226 = vmatprep.subr.mxu0 0.0
    %227 = vmatpush1.msra.mxu0 0.0
    %228 = vmatprep.subr.mxu0 0.0
    %229 = vmatpush1.msra.mxu0 0.0
    %230 = vmatprep.subr.mxu0 0.0
    %231 = vmatpush1.msra.mxu0 0.0
    %232 = vmatprep.subr.mxu0 0.0
    %233 = vmatpush1.msra.mxu0 0.0
    %234 = vmatprep.subr.mxu0 0.0
    %235 = vmatpush1.msra.mxu0 0.0
    %236 = vmatprep.subr.mxu0 0.0
    %237 = vmatpush1.msra.mxu0 0.0
    %238 = vmatprep.subr.mxu0 0.0
    %239 = vmatpush1.msra.mxu0 0.0
    %240 = vmatprep.subr.mxu0 0.0
    %241 = vmatpush1.msra.mxu0 0.0
    %242 = vmatprep.subr.mxu0 0.0
    %243 = vmatpush1.msra.mxu0 0.0
    %244 = vmatprep.subr.mxu0 0.0
    %245 = vmatpush1.msra.mxu0 0.0
    %246 = vmatprep.subr.mxu0 0.0
    %247 = vmatpush1.msra.mxu0 0.0
    %248 = vmatprep.subr.mxu0 0.0
    %249 = vmatpush1.msra.mxu0 0.0
    %250 = vmatprep.subr.mxu0 0.0
    %251 = vmatpush1.msra.mxu0 0.0
    %252 = vmatprep.subr.mxu0 0.0
    %253 = vmatpush1.msra.mxu0 0.0
    %254 = vmatprep.subr.mxu0 0.0
    %255 = vmatpush1.msra.mxu0 0.0
    %256 = vmatprep.subr.mxu0 0.0
    %257 = vmatpush1.msra.mxu0 0.0
    %258 = vmatprep.subr.mxu0 0.0
    %259 = vmatpush1.msra.mxu0 0.0
    %260 = vmatprep.subr.mxu0 0.0
    %261 = vmatpush1.msra.mxu0 0.0
    %262 = vmatprep.subr.mxu0 0.0
    %263 = vmatpush1.msra.mxu0 0.0
    %264 = vmatprep.subr.mxu0 0.0
    %265 = vmatpush1.msra.mxu0 0.0
    %266 = vmatprep.subr.mxu0 0.0
    %267 = vmatpush1.msra.mxu0 0.0
    %268 = vmatprep.subr.mxu0 0.0
    %269 = vmatpush1.msra.mxu0 0.0
    %270 = vmatprep.subr.mxu0 0.0
    %271 = vmatpush1.msra.mxu0 0.0
    %272 = vmatprep.subr.mxu0 0.0
    %273 = vmatpush1.msra.mxu0 0.0
    %274 = vmatprep.mubr.f32.mxu0 0.0
    %275 = vmatmul.mubr.f32.gmra.mrb[0].mxu0 %v208
    %v276 = vpop.f32.mrb[0].mxu0
    %v277 = vadd.f32 %v206, %v276
    %v278 = vpop.f32.mrb[0].mxu0
    %279 = vdwg.mxu0
    %v280 = vmax.f32 %v277, 0.0
    %s281 = scalar_lea.vmem [#allocation2], 96
    %v282 = vld [vmem:[%s281] sm:$0xff]
    %v283 = vld [vmem:[%s281 + $0x8] sm:$0xff]
    %v284 = vld [vmem:[%s281 + $0x10] sm:$0xff]
    %v285 = vld [vmem:[%s281 + $0x18] sm:$0xff]
    %v286 = vld [vmem:[%s2 + $0x3] sm:$0x1]
    %v287 = vlaneseq
    %v288 = vshrl.u32 %v287, 7
    %v289 = vsub.s32 0, %v288
    %v290 = vrot.slane %v286, %v289
    %v292 = vsel %vm38, %v280, 0
    %294 = vmatprep.subr.mxu0 0.0
    %295 = vmatpush1.msra.mxu0 %v282
    %296 = vmatprep.subr.mxu0 0.0
    %297 = vmatpush1.msra.mxu0 %v283
    %298 = vmatprep.subr.mxu0 0.0
    %299 = vmatpush1.msra.mxu0 %v284
    %300 = vmatprep.subr.mxu0 0.0
    %301 = vmatpush1.msra.mxu0 %v285
    %302 = vmatprep.subr.mxu0 0.0
    %303 = vmatpush1.msra.mxu0 0.0
    %304 = vmatprep.subr.mxu0 0.0
    %305 = vmatpush1.msra.mxu0 0.0
    %306 = vmatprep.subr.mxu0 0.0
    %307 = vmatpush1.msra.mxu0 0.0
    %308 = vmatprep.subr.mxu0 0.0
    %309 = vmatpush1.msra.mxu0 0.0
    %310 = vmatprep.subr.mxu0 0.0
    %311 = vmatpush1.msra.mxu0 0.0
    %312 = vmatprep.subr.mxu0 0.0
    %313 = vmatpush1.msra.mxu0 0.0
    %314 = vmatprep.subr.mxu0 0.0
    %315 = vmatpush1.msra.mxu0 0.0
    %316 = vmatprep.subr.mxu0 0.0
    %317 = vmatpush1.msra.mxu0 0.0
    %318 = vmatprep.subr.mxu0 0.0
    %319 = vmatpush1.msra.mxu0 0.0
    %320 = vmatprep.subr.mxu0 0.0
    %321 = vmatpush1.msra.mxu0 0.0
    %322 = vmatprep.subr.mxu0 0.0
    %323 = vmatpush1.msra.mxu0 0.0
    %324 = vmatprep.subr.mxu0 0.0
    %325 = vmatpush1.msra.mxu0 0.0
    %326 = vmatprep.subr.mxu0 0.0
    %327 = vmatpush1.msra.mxu0 0.0
    %328 = vmatprep.subr.mxu0 0.0
    %329 = vmatpush1.msra.mxu0 0.0
    %330 = vmatprep.subr.mxu0 0.0
    %331 = vmatpush1.msra.mxu0 0.0
    %332 = vmatprep.subr.mxu0 0.0
    %333 = vmatpush1.msra.mxu0 0.0
    %334 = vmatprep.subr.mxu0 0.0
    %335 = vmatpush1.msra.mxu0 0.0
    %336 = vmatprep.subr.mxu0 0.0
    %337 = vmatpush1.msra.mxu0 0.0
    %338 = vmatprep.subr.mxu0 0.0
    %339 = vmatpush1.msra.mxu0 0.0
    %340 = vmatprep.subr.mxu0 0.0
    %341 = vmatpush1.msra.mxu0 0.0
    %342 = vmatprep.subr.mxu0 0.0
    %343 = vmatpush1.msra.mxu0 0.0
    %344 = vmatprep.subr.mxu0 0.0
    %345 = vmatpush1.msra.mxu0 0.0
    %346 = vmatprep.subr.mxu0 0.0
    %347 = vmatpush1.msra.mxu0 0.0
    %348 = vmatprep.subr.mxu0 0.0
    %349 = vmatpush1.msra.mxu0 0.0
    %350 = vmatprep.subr.mxu0 0.0
    %351 = vmatpush1.msra.mxu0 0.0
    %352 = vmatprep.subr.mxu0 0.0
    %353 = vmatpush1.msra.mxu0 0.0
    %354 = vmatprep.subr.mxu0 0.0
    %355 = vmatpush1.msra.mxu0 0.0
    %356 = vmatprep.subr.mxu0 0.0
    %357 = vmatpush1.msra.mxu0 0.0
    %358 = vmatprep.mubr.f32.mxu0 0.0
    %359 = vmatmul.mubr.f32.gmra.mrb[0].mxu0 %v292
    %v360 = vpop.f32.mrb[0].mxu0
    %v361 = vadd.f32 %v290, %v360
    %v362 = vpop.f32.mrb[0].mxu0
    %363 = vdwg.mxu0
    %364 = vst [vmem:[%s3] sm:$0xff] %v361
    // Predicated region
    $region18: #{simple_nn_forward.1} parent=1 // pred_check
      _
    $region19: #{simple_nn_forward.1} parent=1 // pred_check_branch
      %366 = sbr.rel (0) target = $region21
    $region20: #{simple_nn_forward.1} parent=1 // pred_region
      _
    $region21: #{simple_nn_forward.1} parent=1 // pred_fallthru
      _
    // Predicated region
    $region22: #{simple_nn_forward.1} parent=1 // pred_check
      _
    $region23: #{simple_nn_forward.1} parent=1 // pred_check_branch
      %368 = sbr.rel (0) target = $region25
    $region24: #{simple_nn_forward.1} parent=1 // pred_region
      _
    $region25: #{simple_nn_forward.1} parent=1 // pred_fallthru
      _
    %369 = vsyncpa [#allocation3], 1

</llo_original>
